<compile_context>
chip_gen: v6e
topology: v6e:2x2x1
jax: 0.10.0
libtpu: 0.0.40
codegen_flags: <defaults>
</compile_context>

<pallas_src>
import functools

import jax
import jax.numpy as jnp
from jax import lax
from jax.experimental import pallas as pl
from jax.experimental.pallas import tpu as pltpu

_LANES = 128
_SUBLANES = 8
_CHUNK_ROWS = 256   # rows per in-kernel sub-slice (bounds VMEM intermediates)


def _device_config():
    """Per-TPU-generation tiling config. Conservative default for unknowns."""
    kind = ""
    try:
        kind = jax.devices()[0].device_kind.lower()
    except Exception:
        pass
    if "v7" in kind:
        # 2 TensorCores / chip, 64 MiB physical VMEM per TC.
        return dict(tile_rows=8192, cores=2, vmem_limit=48 * 1024 * 1024)
    if "v6" in kind:
        return dict(tile_rows=8192, cores=1, vmem_limit=64 * 1024 * 1024)
    if "v5" in kind:
        return dict(tile_rows=4096, cores=1, vmem_limit=32 * 1024 * 1024)
    return dict(tile_rows=4096, cores=1, vmem_limit=32 * 1024 * 1024)


def _rmse_sumsq_kernel(yhat_ref, y_ref, psum_ref, *, tile_rows, chunk_rows,
                       tiles_per_core, valid_rows, ragged):
    c = pl.program_id(0)   # core axis (CORE_PARALLEL on v7x, size 1 elsewhere)
    i = pl.program_id(1)   # row-tile axis (reduction; output block stays resident)

    @pl.when(i == 0)
    def _init():
        psum_ref[...] = jnp.zeros_like(psum_ref)

    # Unclamped global row offset of this tile.  The clamped index map may
    # re-read the last tile on out-of-range steps; those rows are zeroed by
    # the mask in the ragged/edge path.
    row_base = (c * tiles_per_core + i) * tile_rows

    def chunk_sumsq(start, n_rows, masked):
        d = (yhat_ref[pl.ds(start, n_rows), :].astype(jnp.float32)
             - y_ref[pl.ds(start, n_rows), :].astype(jnp.float32))
        dd = d * d
        if masked:
            row_ids = (row_base + start) + lax.broadcasted_iota(
                jnp.int32, (n_rows, _LANES), 0)
            dd = jnp.where(row_ids < valid_rows, dd, 0.0)
        # VPU-only fold onto an (8,128) vreg-shaped partial sum.
        return dd.reshape(n_rows // _SUBLANES, _SUBLANES, _LANES).sum(axis=0)

    def accumulate(masked):
        if chunk_rows is None:
            # Tiny / non-multiple-of-8 tile (only when the whole slab is one
            # small tile): one cheap sublane reduce on the full block.
            d = (yhat_ref[...].astype(jnp.float32)
                 - y_ref[...].astype(jnp.float32))
            dd = d * d
            if masked:
                row_ids = row_base + lax.broadcasted_iota(
                    jnp.int32, (tile_rows, _LANES), 0)
                dd = jnp.where(row_ids < valid_rows, dd, 0.0)
            psum_ref[0:1, :] += jnp.sum(dd, axis=0, keepdims=True)
            return

        n_full = tile_rows // chunk_rows
        rem = tile_rows - n_full * chunk_rows

        def body(k, acc):
            start = pl.multiple_of(k * chunk_rows, chunk_rows)
            return acc + chunk_sumsq(start, chunk_rows, masked)

        acc = lax.fori_loop(0, n_full, body,
                            jnp.zeros((_SUBLANES, _LANES), jnp.float32))
        if rem:
            acc = acc + chunk_sumsq(n_full * chunk_rows, rem, masked)
        psum_ref[...] += acc

    if ragged:
        tile_end = row_base + tile_rows

        @pl.when(tile_end <= valid_rows)
        def _interior():
            accumulate(masked=False)

        @pl.when(tile_end > valid_rows)
        def _edge():
            accumulate(masked=True)
    else:
        accumulate(masked=False)


def rmse_loss(yhat, y, eps=1e-6, tile_rows=None):
    """sqrt(mean((yhat - y)**2) + eps), matching the PyTorch RMSELoss module."""
    assert yhat.shape == y.shape, "yhat and y must have the same shape"
    n_elems = yhat.size
    if n_elems == 0:
        return jnp.sqrt(jnp.float32(eps))

    cfg = _device_config()
    vmem_limit = cfg["vmem_limit"]
    if tile_rows is None:
        tile_rows = cfg["tile_rows"]

    flat_yhat = yhat.reshape(-1)
    flat_y = y.reshape(-1)

    rows = n_elems // _LANES          # 128-aligned prefix, handled by the kernel
    n_main = rows * _LANES

    total = jnp.float32(0.0)

    if rows > 0:
        yhat2d = flat_yhat[:n_main].reshape(rows, _LANES)
        y2d = flat_y[:n_main].reshape(rows, _LANES)

        # Clamp tile_rows so the double-buffered input blocks (2 inputs x
        # 2 buffers) use at most ~half the scoped-VMEM budget.
        itemsize = jnp.dtype(yhat.dtype).itemsize
        max_tile_rows = (vmem_limit // 2) // (2 * 2 * _LANES * itemsize)
        max_tile_rows = max(_SUBLANES, (max_tile_rows // _SUBLANES) * _SUBLANES)
        tile_rows = min(int(tile_rows), max_tile_rows)

        if tile_rows >= rows:
            tile_rows = rows                                  # one full-extent tile
            tiles = 1
        else:
            tile_rows = max(_SUBLANES, (tile_rows // _SUBLANES) * _SUBLANES)
            tiles = (rows + tile_rows - 1) // tile_rows

        # Dual-TensorCore split only on v7x; single stream elsewhere.
        num_cores = cfg["cores"] if tiles >= 2 else 1
        tiles_per_core = (tiles + num_cores - 1) // num_cores
        ragged = (num_cores * tiles_per_core * tile_rows) > rows

        chunk_rows = min(_CHUNK_ROWS, tile_rows) if tile_rows % _SUBLANES == 0 else None

        kernel = functools.partial(
            _rmse_sumsq_kernel,
            tile_rows=tile_rows,
            chunk_rows=chunk_rows,
            tiles_per_core=tiles_per_core,
            valid_rows=rows,
            ragged=ragged,
        )

        def in_map(c, i):
            # Clamp so DMAs never start past the slab; any duplicated
            # out-of-range tiles are fully zeroed by the in-kernel row mask.
            return (jnp.minimum(c * tiles_per_core + i, tiles - 1), 0)

        core_sem = pltpu.CORE_PARALLEL if num_cores > 1 else pltpu.ARBITRARY

        partials = pl.pallas_call(
            kernel,
            out_shape=jax.ShapeDtypeStruct((num_cores * _SUBLANES, _LANES),
                                           jnp.float32),
            grid_spec=pltpu.PrefetchScalarGridSpec(
                num_scalar_prefetch=0,
                grid=(num_cores, tiles_per_core),
                in_specs=[
                    pl.BlockSpec((tile_rows, _LANES), in_map),
                    pl.BlockSpec((tile_rows, _LANES), in_map),
                ],
                out_specs=pl.BlockSpec((_SUBLANES, _LANES), lambda c, i: (c, 0)),
            ),
            compiler_params=pltpu.CompilerParams(
                dimension_semantics=(core_sem, pltpu.ARBITRARY),
                vmem_limit_bytes=vmem_limit),
            cost_estimate=pl.CostEstimate(
                flops=3 * n_main,
                transcendentals=0,
                bytes_accessed=2 * n_main * itemsize
                               + num_cores * _SUBLANES * _LANES * 4),
        )(yhat2d, y2d)

        total = total + jnp.sum(partials)

    if n_main < n_elems:
        # <128-element tail: O(128) plain-JAX work instead of a full-tensor pad.
        tail_d = (flat_yhat[n_main:].astype(jnp.float32)
                  - flat_y[n_main:].astype(jnp.float32))
        total = total + jnp.sum(tail_d * tail_d)

    return jnp.sqrt(total / jnp.float32(n_elems) + jnp.float32(eps))


if __name__ == "__main__":
    key = jax.random.PRNGKey(0)
    k1, k2 = jax.random.split(key)
    shape = (2, 4, 16, 16)  # NCHW, like the PyTorch module's typical input
    yhat = jax.random.normal(k1, shape, dtype=jnp.float32)
    y = jax.random.normal(k2, shape, dtype=jnp.float32)

    loss = rmse_loss(yhat, y, eps=1e-6)
    loss = jax.block_until_ready(loss)

    # Reference check (plain JAX) for correctness.
    ref = jnp.sqrt(jnp.mean((yhat - y) ** 2) + 1e-6)
    assert jnp.allclose(loss, ref, rtol=1e-5, atol=1e-6), (loss, ref)

    print("KERNEL_OK")
</pallas_src>

<mosaic_0001>
module attributes {stable_mosaic.version = 11 : i64} {
  func.func @_rmse_sumsq_kernel(%arg0: i32, %arg1: i32, %arg2: memref<16x128xf32, #tpu.memory_space<vmem>>, %arg3: memref<16x128xf32, #tpu.memory_space<vmem>>, %arg4: memref<8x128xf32, #tpu.memory_space<vmem>>) attributes {dimension_semantics = [#tpu.dimension_semantics<arbitrary>, #tpu.dimension_semantics<arbitrary>], iteration_bounds = array<i64: 1, 1>, scalar_prefetch = 0 : i64, scratch_operands = 0 : i64, tpu.core_type = #tpu.core_type<tc>, window_params = [{transform_indices = @transform_0, window_bounds = array<i64: 16, 128>}, {transform_indices = @transform_1, window_bounds = array<i64: 16, 128>}, {transform_indices = @transform_2, window_bounds = array<i64: 8, 128>}]} {
    %c0_i32 = arith.constant 0 : i32
    %0 = arith.cmpi eq, %arg1, %c0_i32 : i32
    %1 = arith.extui %0 : i1 to i32
    %c0_i32_0 = arith.constant 0 : i32
    %2 = arith.cmpi ne, %1, %c0_i32_0 : i32
    scf.if %2 {
      %cst_8 = arith.constant 0.000000e+00 : f32
      %18 = vector.broadcast %cst_8 : f32 to vector<8x128xf32>
      %c0_9 = arith.constant 0 : index
      %c0_10 = arith.constant 0 : index
      %19 = vector.load %arg4[%c0_9, %c0_10] : memref<8x128xf32, #tpu.memory_space<vmem>>, vector<8x128xf32>
      tpu.vector_store %arg4[%c0_9, %c0_10], %18 {strides = array<i32>} : memref<8x128xf32, #tpu.memory_space<vmem>>, vector<8x128xf32>,
    } else {
    }
    %cst = arith.constant 0.000000e+00 : f32
    %3 = vector.broadcast %cst : f32 to vector<8x128xf32>
    %c0_i32_1 = arith.constant 0 : i32
    %c16_i32 = arith.constant 16 : i32
    %4 = arith.muli %c0_i32_1, %c16_i32 : i32
    %5 = tpu.assume_multiple %4, 16 : i32
    %6 = arith.index_cast %5 : i32 to index
    %c0 = arith.constant 0 : index
    %7 = vector.load %arg2[%6, %c0] : memref<16x128xf32, #tpu.memory_space<vmem>>, vector<16x128xf32>
    %8 = arith.index_cast %5 : i32 to index
    %c0_2 = arith.constant 0 : index
    %9 = vector.load %arg3[%8, %c0_2] : memref<16x128xf32, #tpu.memory_space<vmem>>, vector<16x128xf32>
    %10 = arith.subf %7, %9 : vector<16x128xf32>
    %11 = arith.mulf %10, %10 : vector<16x128xf32>
    %12 = vector.shape_cast %11 : vector<16x128xf32> to vector<2x8x128xf32>
    %cst_3 = arith.constant dense<0.000000e+00> : vector<8x128xf32>
    %13 = vector.multi_reduction <add>, %12, %cst_3 [0] : vector<2x8x128xf32> to vector<8x128xf32>
    %14 = arith.addf %3, %13 : vector<8x128xf32>
    %c1_i32 = arith.constant 1 : i32
    %c0_4 = arith.constant 0 : index
    %c0_5 = arith.constant 0 : index
    %15 = vector.load %arg4[%c0_4, %c0_5] : memref<8x128xf32, #tpu.memory_space<vmem>>, vector<8x128xf32>
    %16 = arith.addf %15, %14 : vector<8x128xf32>
    %c0_6 = arith.constant 0 : index
    %c0_7 = arith.constant 0 : index
    %17 = vector.load %arg4[%c0_6, %c0_7] : memref<8x128xf32, #tpu.memory_space<vmem>>, vector<8x128xf32>
    tpu.vector_store %arg4[%c0_6, %c0_7], %16 {strides = array<i32>} : memref<8x128xf32, #tpu.memory_space<vmem>>, vector<8x128xf32>,
    return
  }
  func.func @transform_0(%arg0: i32, %arg1: i32) -> (i32, i32) {
    %c1_i32 = arith.constant 1 : i32
    %0 = arith.muli %arg0, %c1_i32 : i32
    %1 = arith.addi %0, %arg1 : i32
    %c0_i32 = arith.constant 0 : i32
    %2 = arith.minsi %1, %c0_i32 : i32
    %c0_i32_0 = arith.constant 0 : i32
    %c0_i32_1 = arith.constant 0 : i32
    return %2, %c0_i32_0 : i32, i32
  }
  func.func @transform_1(%arg0: i32, %arg1: i32) -> (i32, i32) {
    %c1_i32 = arith.constant 1 : i32
    %0 = arith.muli %arg0, %c1_i32 : i32
    %1 = arith.addi %0, %arg1 : i32
    %c0_i32 = arith.constant 0 : i32
    %2 = arith.minsi %1, %c0_i32 : i32
    %c0_i32_0 = arith.constant 0 : i32
    %c0_i32_1 = arith.constant 0 : i32
    return %2, %c0_i32_0 : i32, i32
  }
  func.func @transform_2(%arg0: i32, %arg1: i32) -> (i32, i32) {
    %c0_i32 = arith.constant 0 : i32
    %c0_i32_0 = arith.constant 0 : i32
    return %arg0, %c0_i32 : i32, i32
  }
}

</mosaic_0001>

<llo_original>
// kernel: tpu_custom_call.1
$region0: #{tpu_custom_call.1}
  #allocation0 [shape = 'u32[]', space=smem, size = 0x4, offset = 0x4, fixed_abs, tag = 'smem constant byte address 0x4 - core index']
  #allocation1 [shape = 'u32[144,128]{1,0:T(1,128)}', space=vmem, size = 0x12000, scoped, tag = 'internal scratch']
  %s0 = inlined_call_operand.hbm [shape: f32[16,128], index: 0, kind: input, shape index: {}]
  %s1 = inlined_call_operand.hbm [shape: f32[16,128], index: 1, kind: input, shape index: {}]
  %s2 = inlined_call_operand.hbm [shape: f32[8,128], index: 2, kind: output, shape index: {}]
  %s3 = sld [smem:[#allocation0]]
  $region30: #{tpu_custom_call.1} parent=0
    _
  %s5 = ssub.s32 1, %s3
  %s6 = scalar_select 0, %s5, %s3
  $region1: #{tpu_custom_call.1} parent=0
    #allocation2 [shape = 'u8[8192]{0}', space=vmem, size = 0x2000, scoped, tag = 'input window, operand 0, single buffered']
    #allocation3 [shape = 's32[1]{0}', space=sflag, size = 0x4, scoped, tag = 'scoped memory for tpu_custom_call.1']
    #allocation4 [shape = 's32[1]{0}', space=sflag, size = 0x4, scoped, tag = 'scoped memory for tpu_custom_call.1']
    #allocation5 [shape = 'u8[8192]{0}', space=vmem, size = 0x2000, scoped, tag = 'input window, operand 1, single buffered']
    #allocation6 [shape = 's32[1]{0}', space=sflag, size = 0x4, scoped, tag = 'scoped memory for tpu_custom_call.1']
    #allocation7 [shape = 'u8[4096]{0}', space=vmem, size = 0x1000, scoped, tag = 'output window, operand 0, single buffered']
    %7 = vsyncpa [#allocation3], 0
    %8 = vsyncpa [#allocation6], 0
    %9 = vsyncpa [#allocation4], 0
    // Predicated region
    $region2: #{tpu_custom_call.1} parent=1 // pred_check
      _
    $region3: #{tpu_custom_call.1} parent=1 // pred_check_branch
      %11 = sbr.rel (0) target = $region5
    $region4: #{tpu_custom_call.1} parent=1 // pred_region
      %s12 = sadd.s32 0, 0
      %p13 = scmp.lt.s32.totalorder %s12, 0
      %s14 = scalar_select %p13, %s12, 0
      %s15 = smul.u32 2, %s14
      %s17 = ssub.s32 256, 256
      %18 = vsyncadd [#allocation3], %s17
      %s19 = smul.addr %s15, 128
      %s20 = scalar_lea.hbm %s0, %s19
      %s21 = sshll.u32 [#allocation2], 4
      %s22 = int_to_ptr.vmem [resolvable:$true] %s21
      %27 = dma.hbm_to_vmem [thread:$0]  %s20, 256, %s22, [#allocation3], 128, 128, 8
    $region5: #{tpu_custom_call.1} parent=1 // pred_fallthru
      _
    // Predicated region
    $region6: #{tpu_custom_call.1} parent=1 // pred_check
      _
    $region7: #{tpu_custom_call.1} parent=1 // pred_check_branch
      %29 = sbr.rel (0) target = $region9
    $region8: #{tpu_custom_call.1} parent=1 // pred_region
      %s30 = sadd.s32 0, 0
      %p31 = scmp.lt.s32.totalorder %s30, 0
      %s32 = scalar_select %p31, %s30, 0
      %s33 = smul.u32 2, %s32
      %s35 = ssub.s32 256, 256
      %36 = vsyncadd [#allocation6], %s35
      %s37 = smul.addr %s33, 128
      %s38 = scalar_lea.hbm %s1, %s37
      %s39 = sshll.u32 [#allocation5], 4
      %s40 = int_to_ptr.vmem [resolvable:$true] %s39
      %45 = dma.hbm_to_vmem [thread:$0]  %s38, 256, %s40, [#allocation6], 128, 128, 8
    $region9: #{tpu_custom_call.1} parent=1 // pred_fallthru
      _
    // Predicated region
    $region10: #{tpu_custom_call.1} parent=1 // pred_check
      _
    $region11: #{tpu_custom_call.1} parent=1 // pred_check_branch
      %47 = sbr.rel (0) target = $region13
    $region12: #{tpu_custom_call.1} parent=1 // pred_region
      %48 = dma.done [#allocation3], 256
    $region13: #{tpu_custom_call.1} parent=1 // pred_fallthru
      _
    // Predicated region
    $region14: #{tpu_custom_call.1} parent=1 // pred_check
      _
    $region15: #{tpu_custom_call.1} parent=1 // pred_check_branch
      %50 = sbr.rel (0) target = $region17
    $region16: #{tpu_custom_call.1} parent=1 // pred_region
      %51 = dma.done [#allocation6], 256
    $region17: #{tpu_custom_call.1} parent=1 // pred_fallthru
      _
    %s52 = sadd.s32 0, 0
    %p53 = scmp.lt.s32.totalorder %s52, 0
    %s54 = scalar_select %p53, %s52, 0
    %s55 = smul.u32 2, %s54
    %s56 = sadd.s32 0, 0
    %p57 = scmp.lt.s32.totalorder %s56, 0
    %s58 = scalar_select %p57, %s56, 0
    %s59 = smul.u32 2, %s58
    %p60 = scmp.eq.s32.totalorder 0, 0
    // Predicated region
    $region18: #{tpu_custom_call.1} parent=1 // pred_check
      %p61 = pneg %p60
    $region19: #{tpu_custom_call.1} parent=1 // pred_check_branch
      %63 = sbr.rel (%p61) target = $region21
    $region20: #{tpu_custom_call.1} parent=1 // pred_region
      %64 = vst [vmem:[#allocation7] sm:$0xff] 0.0
    $region21: #{tpu_custom_call.1} parent=1 // pred_fallthru
      _
    %v65 = vld [vmem:[#allocation2] sm:$0xff]
    %v66 = vld [vmem:[#allocation2 + $0x8] sm:$0xff]
    %v67 = vld [vmem:[#allocation5] sm:$0xff]
    %v68 = vld [vmem:[#allocation5 + $0x8] sm:$0xff]
    %v69 = vsub.f32 %v65, %v67
    %v70 = vsub.f32 %v66, %v68
    %v71 = vmul.f32 %v69, %v69
    %v72 = vmul.f32 %v70, %v70
    %v73 = vadd.f32 %v71, %v72
    %v74 = vadd.f32 %v73, 0.0
    %v75 = vld [vmem:[#allocation7] sm:$0xff]
    %v76 = vadd.f32 %v75, %v74
    %77 = vst [vmem:[#allocation7] sm:$0xff] %v76
    // Predicated region
    $region22: #{tpu_custom_call.1} parent=1 // pred_check
      _
    $region23: #{tpu_custom_call.1} parent=1 // pred_check_branch
      %79 = sbr.rel (0) target = $region25
    $region24: #{tpu_custom_call.1} parent=1 // pred_region
      %s81 = ssub.s32 128, 128
      %82 = vsyncadd [#allocation4], %s81
      %s84 = sshll.u32 [#allocation7], 4
      %s85 = int_to_ptr.vmem [resolvable:$true] %s84
      %87 = dma.vmem_to_hbm [thread:$0]  %s85, 128, %s2, [#allocation4]
    $region25: #{tpu_custom_call.1} parent=1 // pred_fallthru
      _
    // Predicated region
    $region26: #{tpu_custom_call.1} parent=1 // pred_check
      _
    $region27: #{tpu_custom_call.1} parent=1 // pred_check_branch
      %89 = sbr.rel (0) target = $region29
    $region28: #{tpu_custom_call.1} parent=1 // pred_region
      %90 = dma.done [#allocation4], 128
    $region29: #{tpu_custom_call.1} parent=1 // pred_fallthru
      _
    %91 = vsyncpa [#allocation3], 1
    %92 = vsyncpa [#allocation6], 1
    %93 = vsyncpa [#allocation4], 1

</llo_original>
